<compile_context>
chip_gen: v7x
topology: tpu7x:2x2x1
jax: 0.10.0
libtpu: 0.0.40
codegen_flags: <defaults>
</compile_context>

<pallas_src>
import jax
import jax.numpy as jnp
from jax.experimental import pallas as pl
from jax.experimental.pallas import tpu as pltpu


def _make_contrastive_kernel(margin, eps, batch, block_rows):
    # Keep these as Python scalars so they fold into the traced kernel as
    # literals (jnp scalars here would be captured constants -> trace error).
    margin = float(margin)
    eps = float(eps)
    inv_b = 1.0 / float(batch)
    batch = int(batch)
    block_rows = int(block_rows)

    def kernel(e1_ref, e2_ref, lbl_ref, out_ref, acc_ref):
        i = pl.program_id(0)
        last = pl.num_programs(0) - 1

        @pl.when(i == 0)
        def _():
            acc_ref[...] = jnp.zeros_like(acc_ref)
            out_ref[...] = jnp.zeros_like(out_ref)

        # Per-row squared Euclidean distance (PyTorch adds eps to the diff).
        d = e1_ref[...].astype(jnp.float32) - e2_ref[...].astype(jnp.float32) + eps
        sq = jnp.sum(d * d, axis=1, keepdims=True)        # (TM, 1) lane reduce
        dist = jnp.sqrt(sq)                               # EUP slot (free-ish)

        lbl = lbl_ref[...]                                # (TM, 1) f32
        hinge = jnp.maximum(margin - dist, 0.0)
        per_row = (1.0 - lbl) * sq + lbl * (hinge * hinge)

        # Steady state: just accumulate into the resident (TM, 1) scratch.
        @pl.when(i < last)
        def _():
            acc_ref[...] += per_row

        # Last step: mask rows beyond the true batch (partial last block may
        # hold undefined DMA data -> NaNs are squashed by the select), then
        # do the single cross-sublane reduce and the 1/B scale.
        @pl.when(i == last)
        def _():
            row = jax.lax.broadcasted_iota(jnp.int32, per_row.shape, 0)
            row = row + i * block_rows
            acc_ref[...] += jnp.where(row < batch, per_row, 0.0)
            out_ref[...] = jnp.sum(acc_ref[...], axis=0, keepdims=True) * inv_b

    return kernel


def contrastive_loss(embeddings1, embeddings2, label, margin=5.0, eps=1e-6,
                     vmem_budget_bytes=40 * 1024 * 1024):
    """embeddings1/2: (B, D) (any float dtype), label: (B,) in {0,1} -> f32 scalar."""
    B, D = embeddings1.shape
    assert embeddings2.shape == (B, D)

    itemsize = jnp.dtype(embeddings1.dtype).itemsize
    # Sublane multiple: 8 for 32-bit, 16 for bf16/fp16, 32 for 8-bit.
    sub = 8 * max(1, 4 // itemsize)

    # Tile rows by VMEM budget: 2 embedding inputs x 2 pipeline buffers each.
    tm_budget = max(1, vmem_budget_bytes // (2 * 2 * D * itemsize))
    if B <= tm_budget:
        tm = B                                  # full dim -> always a legal block
    else:
        tm = max(sub, (tm_budget // sub) * sub)
    grid = (pl.cdiv(B, tm),)

    lbl = label.astype(jnp.float32).reshape(B, 1)

    out = pl.pallas_call(
        _make_contrastive_kernel(margin, eps, B, tm),
        out_shape=jax.ShapeDtypeStruct((1, 1), jnp.float32),
        grid=grid,
        in_specs=[
            pl.BlockSpec((tm, D), lambda i: (i, 0)),
            pl.BlockSpec((tm, D), lambda i: (i, 0)),
            pl.BlockSpec((tm, 1), lambda i: (i, 0)),
        ],
        out_specs=pl.BlockSpec((1, 1), lambda i: (0, 0)),
        scratch_shapes=[pltpu.VMEM((tm, 1), jnp.float32)],
        compiler_params=pltpu.CompilerParams(
            dimension_semantics=("arbitrary",),      # reduction axis, output resident
            vmem_limit_bytes=48 * 1024 * 1024),      # fits v7x (64 MiB) and v5e/v6e
        cost_estimate=pl.CostEstimate(
            flops=4 * B * D,
            transcendentals=B,
            bytes_accessed=2 * B * D * itemsize + B * 4 + 4),
    )(embeddings1, embeddings2, lbl)
    return out[0, 0]


def _ref_loss(a, b, lbl, margin=5.0, eps=1e-6):
    diff = a.astype(jnp.float32) - b.astype(jnp.float32) + eps
    dist = jnp.sqrt(jnp.sum(diff * diff, axis=1))
    return jnp.mean((1.0 - lbl) * dist ** 2
                    + lbl * jnp.maximum(margin - dist, 0.0) ** 2)


if __name__ == "__main__":
    key = jax.random.PRNGKey(0)
    k1, k2, k3, k4, k5, k6 = jax.random.split(key, 6)

    # Case 1: small f32, single block.
    B, D = 8, 32
    e1 = jax.random.normal(k1, (B, D), dtype=jnp.float32)
    e2 = jax.random.normal(k2, (B, D), dtype=jnp.float32)
    label = jax.random.randint(k3, (B,), 0, 2, dtype=jnp.int32).astype(jnp.float32)
    loss = contrastive_loss(e1, e2, label, margin=5.0)
    jax.block_until_ready(loss)
    expected = _ref_loss(e1, e2, label)
    assert jnp.allclose(loss, expected, rtol=1e-5, atol=1e-5), (loss, expected)

    # Case 2: multi-step grid with a partial last block (tiny budget forces
    # tm=8 -> grid of 3, last block masked), f32.
    B2, D2 = 20, 32
    a1 = jax.random.normal(k4, (B2, D2), dtype=jnp.float32)
    a2 = jax.random.normal(k5, (B2, D2), dtype=jnp.float32)
    lab2 = jax.random.randint(k6, (B2,), 0, 2, dtype=jnp.int32).astype(jnp.float32)
    loss2 = contrastive_loss(a1, a2, lab2, margin=5.0, vmem_budget_bytes=4096)
    jax.block_until_ready(loss2)
    expected2 = _ref_loss(a1, a2, lab2)
    assert jnp.allclose(loss2, expected2, rtol=1e-5, atol=1e-5), (loss2, expected2)

    # Case 3: bf16 inputs streamed natively, cast to f32 inside the kernel.
    b1 = a1.astype(jnp.bfloat16)
    b2 = a2.astype(jnp.bfloat16)
    loss3 = contrastive_loss(b1, b2, lab2, margin=5.0)
    jax.block_until_ready(loss3)
    expected3 = _ref_loss(b1, b2, lab2)
    assert jnp.allclose(loss3, expected3, rtol=1e-4, atol=1e-4), (loss3, expected3)

    print("KERNEL_OK")
</pallas_src>

<mosaic_0001>
module attributes {stable_mosaic.version = 11 : i64} {
  func.func @kernel(%arg0: i32, %arg1: memref<8x32xf32, #tpu.memory_space<vmem>>, %arg2: memref<8x32xf32, #tpu.memory_space<vmem>>, %arg3: memref<8x1xf32, #tpu.memory_space<vmem>>, %arg4: memref<1x1xf32, #tpu.memory_space<vmem>>, %arg5: memref<8x1xf32, #tpu.memory_space<vmem>>) attributes {dimension_semantics = [#tpu.dimension_semantics<arbitrary>], iteration_bounds = array<i64: 1>, scalar_prefetch = 0 : i64, scratch_operands = 1 : i64, tpu.core_type = #tpu.core_type<tc>, window_params = [{transform_indices = @transform_0, window_bounds = array<i64: 8, 32>}, {transform_indices = @transform_1, window_bounds = array<i64: 8, 32>}, {transform_indices = @transform_2, window_bounds = array<i64: 8, 1>}, {pipeline_mode = #tpu.pipeline_mode<synchronous>, transform_indices = @transform_3, window_bounds = array<i64: 1, 1>}]} {
    %c0_i32 = arith.constant 0 : i32
    %0 = arith.cmpi eq, %arg0, %c0_i32 : i32
    %1 = arith.extui %0 : i1 to i32
    %c0_i32_0 = arith.constant 0 : i32
    %2 = arith.cmpi ne, %1, %c0_i32_0 : i32
    scf.if %2 {
      %cst_14 = arith.constant 0.000000e+00 : f32
      %29 = vector.broadcast %cst_14 : f32 to vector<8x1xf32>
      %c0_15 = arith.constant 0 : index
      %c0_16 = arith.constant 0 : index
      %30 = vector.load %arg5[%c0_15, %c0_16] : memref<8x1xf32, #tpu.memory_space<vmem>>, vector<8x1xf32>
      tpu.vector_store %arg5[%c0_15, %c0_16], %29 {strides = array<i32>} : memref<8x1xf32, #tpu.memory_space<vmem>>, vector<8x1xf32>,
      %cst_17 = arith.constant 0.000000e+00 : f32
      %31 = vector.broadcast %cst_17 : f32 to vector<1x1xf32>
      %c0_18 = arith.constant 0 : index
      %c0_19 = arith.constant 0 : index
      %32 = vector.load %arg4[%c0_18, %c0_19] : memref<1x1xf32, #tpu.memory_space<vmem>>, vector<1x1xf32>
      tpu.vector_store %arg4[%c0_18, %c0_19], %31 {strides = array<i32>} : memref<1x1xf32, #tpu.memory_space<vmem>>, vector<1x1xf32>,
    } else {
    }
    %c0 = arith.constant 0 : index
    %c0_1 = arith.constant 0 : index
    %3 = vector.load %arg1[%c0, %c0_1] : memref<8x32xf32, #tpu.memory_space<vmem>>, vector<8x32xf32>
    %c0_2 = arith.constant 0 : index
    %c0_3 = arith.constant 0 : index
    %4 = vector.load %arg2[%c0_2, %c0_3] : memref<8x32xf32, #tpu.memory_space<vmem>>, vector<8x32xf32>
    %5 = arith.subf %3, %4 : vector<8x32xf32>
    %cst = arith.constant 9.99999997E-7 : f32
    %6 = vector.broadcast %cst : f32 to vector<8x32xf32>
    %7 = arith.addf %5, %6 : vector<8x32xf32>
    %8 = arith.mulf %7, %7 : vector<8x32xf32>
    %cst_4 = arith.constant dense<0.000000e+00> : vector<8xf32>
    %9 = vector.multi_reduction <add>, %8, %cst_4 [1] : vector<8x32xf32> to vector<8xf32>
    %10 = vector.shape_cast %9 : vector<8xf32> to vector<8x1xf32>
    %11 = math.sqrt %10 : vector<8x1xf32>
    %c0_5 = arith.constant 0 : index
    %c0_6 = arith.constant 0 : index
    %12 = vector.load %arg3[%c0_5, %c0_6] : memref<8x1xf32, #tpu.memory_space<vmem>>, vector<8x1xf32>
    %cst_7 = arith.constant 5.000000e+00 : f32
    %13 = vector.broadcast %cst_7 : f32 to vector<8x1xf32>
    %14 = arith.subf %13, %11 : vector<8x1xf32>
    %cst_8 = arith.constant 0.000000e+00 : f32
    %15 = vector.broadcast %cst_8 : f32 to vector<8x1xf32>
    %16 = arith.maximumf %14, %15 : vector<8x1xf32>
    %cst_9 = arith.constant 1.000000e+00 : f32
    %17 = vector.broadcast %cst_9 : f32 to vector<8x1xf32>
    %18 = arith.subf %17, %12 : vector<8x1xf32>
    %19 = arith.mulf %18, %10 : vector<8x1xf32>
    %20 = arith.mulf %16, %16 : vector<8x1xf32>
    %21 = arith.mulf %12, %20 : vector<8x1xf32>
    %22 = arith.addf %19, %21 : vector<8x1xf32>
    %c0_i32_10 = arith.constant 0 : i32
    %23 = arith.cmpi slt, %arg0, %c0_i32_10 : i32
    %24 = arith.extui %23 : i1 to i32
    %c0_i32_11 = arith.constant 0 : i32
    %25 = arith.cmpi ne, %24, %c0_i32_11 : i32
    scf.if %25 {
      %c0_14 = arith.constant 0 : index
      %c0_15 = arith.constant 0 : index
      %29 = vector.load %arg5[%c0_14, %c0_15] : memref<8x1xf32, #tpu.memory_space<vmem>>, vector<8x1xf32>
      %30 = arith.addf %29, %22 : vector<8x1xf32>
      %c0_16 = arith.constant 0 : index
      %c0_17 = arith.constant 0 : index
      %31 = vector.load %arg5[%c0_16, %c0_17] : memref<8x1xf32, #tpu.memory_space<vmem>>, vector<8x1xf32>
      tpu.vector_store %arg5[%c0_16, %c0_17], %30 {strides = array<i32>} : memref<8x1xf32, #tpu.memory_space<vmem>>, vector<8x1xf32>,
    } else {
    }
    %c0_i32_12 = arith.constant 0 : i32
    %26 = arith.cmpi eq, %arg0, %c0_i32_12 : i32
    %27 = arith.extui %26 : i1 to i32
    %c0_i32_13 = arith.constant 0 : i32
    %28 = arith.cmpi ne, %27, %c0_i32_13 : i32
    scf.if %28 {
      %29 = tpu.iota {dimensions = array<i32: 0>} : vector<8x1xi32>
      %c8_i32 = arith.constant 8 : i32
      %30 = arith.muli %arg0, %c8_i32 : i32
      %31 = vector.broadcast %30 : i32 to vector<8x1xi32>
      %32 = arith.addi %29, %31 : vector<8x1xi32>
      %c0_14 = arith.constant 0 : index
      %c0_15 = arith.constant 0 : index
      %33 = vector.load %arg5[%c0_14, %c0_15] : memref<8x1xf32, #tpu.memory_space<vmem>>, vector<8x1xf32>
      %c8_i32_16 = arith.constant 8 : i32
      %34 = vector.broadcast %c8_i32_16 : i32 to vector<8x1xi32>
      %35 = arith.cmpi slt, %32, %34 : vector<8x1xi32>
      %cst_17 = arith.constant 0.000000e+00 : f32
      %36 = vector.broadcast %cst_17 : f32 to vector<8x1xf32>
      %37 = arith.select %35, %22, %36 : vector<8x1xi1>, vector<8x1xf32>
      %38 = arith.addf %33, %37 : vector<8x1xf32>
      %c0_18 = arith.constant 0 : index
      %c0_19 = arith.constant 0 : index
      %39 = vector.load %arg5[%c0_18, %c0_19] : memref<8x1xf32, #tpu.memory_space<vmem>>, vector<8x1xf32>
      tpu.vector_store %arg5[%c0_18, %c0_19], %38 {strides = array<i32>} : memref<8x1xf32, #tpu.memory_space<vmem>>, vector<8x1xf32>,
      %c0_20 = arith.constant 0 : index
      %c0_21 = arith.constant 0 : index
      %40 = vector.load %arg5[%c0_20, %c0_21] : memref<8x1xf32, #tpu.memory_space<vmem>>, vector<8x1xf32>
      %cst_22 = arith.constant dense<0.000000e+00> : vector<1xf32>
      %41 = vector.multi_reduction <add>, %40, %cst_22 [0] : vector<8x1xf32> to vector<1xf32>
      %42 = vector.shape_cast %41 : vector<1xf32> to vector<1x1xf32>
      %cst_23 = arith.constant 1.250000e-01 : f32
      %43 = vector.broadcast %cst_23 : f32 to vector<1x1xf32>
      %44 = arith.mulf %42, %43 : vector<1x1xf32>
      %c0_24 = arith.constant 0 : index
      %c0_25 = arith.constant 0 : index
      %45 = vector.load %arg4[%c0_24, %c0_25] : memref<1x1xf32, #tpu.memory_space<vmem>>, vector<1x1xf32>
      tpu.vector_store %arg4[%c0_24, %c0_25], %44 {strides = array<i32>} : memref<1x1xf32, #tpu.memory_space<vmem>>, vector<1x1xf32>,
    } else {
    }
    return
  }
  func.func @transform_0(%arg0: i32) -> (i32, i32) {
    %c0_i32 = arith.constant 0 : i32
    %c0_i32_0 = arith.constant 0 : i32
    return %arg0, %c0_i32 : i32, i32
  }
  func.func @transform_1(%arg0: i32) -> (i32, i32) {
    %c0_i32 = arith.constant 0 : i32
    %c0_i32_0 = arith.constant 0 : i32
    return %arg0, %c0_i32 : i32, i32
  }
  func.func @transform_2(%arg0: i32) -> (i32, i32) {
    %c0_i32 = arith.constant 0 : i32
    %c0_i32_0 = arith.constant 0 : i32
    return %arg0, %c0_i32 : i32, i32
  }
  func.func @transform_3(%arg0: i32) -> (i32, i32) {
    %c0_i32 = arith.constant 0 : i32
    %c0_i32_0 = arith.constant 0 : i32
    %c0_i32_1 = arith.constant 0 : i32
    return %c0_i32, %c0_i32_0 : i32, i32
  }
}

</mosaic_0001>

<llo_original>
// kernel: tpu_custom_call.1
$region0: #{tpu_custom_call.1}
  #allocation0 [shape = 'u32[]', space=smem, size = 0x4, offset = 0x4, fixed_abs, tag = 'smem constant byte address 0x4 - core index']
  #allocation1 [shape = 'u32[144,128]{1,0:T(1,128)}', space=vmem, size = 0x12000, scoped, tag = 'internal scratch']
  #allocation2 [shape = 'f32[8,1]{1,0:T(8,128)}', space=vmem, size = 0x1000, scoped, tag = 'scratch operand']
  %s0 = inlined_call_operand.vmem [shape: f32[8,32], index: 0, kind: input, shape index: {}]
  %s1 = inlined_call_operand.hbm [shape: f32[8,32], index: 1, kind: input, shape index: {}]
  %s2 = inlined_call_operand.vmem [shape: f32[8,1], index: 2, kind: input, shape index: {}]
  %s3 = inlined_call_operand.hbm [shape: f32[1,1], index: 3, kind: output, shape index: {}]
  %s4 = sld [smem:[#allocation0]]
  $region38: #{tpu_custom_call.1} parent=0
    _
  %s6 = ssub.s32 1, %s4
  %s7 = scalar_select 0, %s6, %s4
  $region1: #{tpu_custom_call.1} parent=0
    #allocation3 [shape = 'u8[4096]{0}', space=vmem, size = 0x1000, scoped, tag = 'input window, operand 1, single buffered']
    #allocation4 [shape = 's32[1]{0}', space=sflag, size = 0x4, scoped, tag = 'scoped memory for tpu_custom_call.1']
    #allocation5 [shape = 's32[1]{0}', space=sflag, size = 0x4, scoped, tag = 'scoped memory for tpu_custom_call.1']
    #allocation6 [shape = 'u8[512]{0}', space=vmem, size = 0x400, scoped, tag = 'output window, operand 0, single buffered']
    %8 = vsyncpa [#allocation4], 0
    %9 = vsyncpa [#allocation5], 0
    // Predicated region
    $region2: #{tpu_custom_call.1} parent=1 // pred_check
      _
    $region3: #{tpu_custom_call.1} parent=1 // pred_check_branch
      %11 = sbr.rel (0) target = $region5
    $region4: #{tpu_custom_call.1} parent=1 // pred_region
      _
    $region5: #{tpu_custom_call.1} parent=1 // pred_fallthru
      _
    // Predicated region
    $region6: #{tpu_custom_call.1} parent=1 // pred_check
      _
    $region7: #{tpu_custom_call.1} parent=1 // pred_check_branch
      %13 = sbr.rel (0) target = $region9
    $region8: #{tpu_custom_call.1} parent=1 // pred_region
      %s15 = ssub.s32 128, 128
      %16 = vsyncadd [#allocation4], %s15
      %s18 = sshll.u32 [#allocation3], 4
      %s19 = int_to_ptr.vmem [resolvable:$true] %s18
      %21 = dma.hbm_to_vmem [thread:$0]  %s1, 128, %s19, [#allocation4]
    $region9: #{tpu_custom_call.1} parent=1 // pred_fallthru
      _
    // Predicated region
    $region10: #{tpu_custom_call.1} parent=1 // pred_check
      _
    $region11: #{tpu_custom_call.1} parent=1 // pred_check_branch
      %23 = sbr.rel (0) target = $region13
    $region12: #{tpu_custom_call.1} parent=1 // pred_region
      _
    $region13: #{tpu_custom_call.1} parent=1 // pred_fallthru
      _
    // Predicated region
    $region14: #{tpu_custom_call.1} parent=1 // pred_check
      _
    $region15: #{tpu_custom_call.1} parent=1 // pred_check_branch
      %25 = sbr.rel (0) target = $region17
    $region16: #{tpu_custom_call.1} parent=1 // pred_region
      %26 = dma.done [#allocation4], 128
    $region17: #{tpu_custom_call.1} parent=1 // pred_fallthru
      _
    %p27 = scmp.eq.s32.totalorder 0, 0
    // Predicated region
    $region18: #{tpu_custom_call.1} parent=1 // pred_check
      %p28 = pneg %p27
    $region19: #{tpu_custom_call.1} parent=1 // pred_check_branch
      %30 = sbr.rel (%p28) target = $region21
    $region20: #{tpu_custom_call.1} parent=1 // pred_region
      %vm31 = vcmask 7168
      %32 = vst.msk [vmem:[#allocation2] sm:$0xff] %vm31, 0.0
      %vm33 = vcmask 0
      %34 = vst.msk [vmem:[#allocation6] sm:$0x1] %vm33, 0.0
    $region21: #{tpu_custom_call.1} parent=1 // pred_fallthru
      _
    %v35 = vld [vmem:[%s0] sm:$0xff]
    %v36 = vld [vmem:[#allocation3] sm:$0xff]
    %v37 = vsub.f32 %v35, %v36
    %v38 = vadd.f32 %v37, 1e-06
    %v39 = vmul.f32 %v38, %v38
    %vm40 = vcmask 261120
    %v41 = vsel %vm40, %v39, 0.0
    %42 = vadd.xlane.f32.xlu0 %v41
    %v43 = vpop.xlane.xlu0 %42
    %v44 = vrsqrt.pop %v43
    %v45 = vmul.f32 %v43, %v44
    %vm46 = vcmp.eq.f32.partialorder %v43, inf
    %v47 = vsel %vm46, %v43, %v45
    %vm48 = vcmp.eq.f32.partialorder %v43, 0.0
    %v49 = vand.u32 %v43, 2147483648
    %v50 = vsel %vm48, %v49, %v47
    %v51 = vld [vmem:[%s2] sm:$0xff]
    %v52 = vsub.f32 5.0, %v50
    %v53 = vmax.f32 %v52, 0.0
    %v54 = vsub.f32 1.0, %v51
    %v55 = vmul.f32 %v54, %v43
    %v56 = vmul.f32 %v53, %v53
    %v57 = vmul.f32 %v51, %v56
    %v58 = vadd.f32 %v55, %v57
    %p59 = scmp.lt.s32.totalorder 0, 0
    // Predicated region
    $region22: #{tpu_custom_call.1} parent=1 // pred_check
      %p60 = pneg %p59
    $region23: #{tpu_custom_call.1} parent=1 // pred_check_branch
      %62 = sbr.rel (%p60) target = $region25
    $region24: #{tpu_custom_call.1} parent=1 // pred_region
      %v63 = vld [vmem:[#allocation2] sm:$0xff]
      %v64 = vadd.f32 %v63, %v58
      %vm65 = vcmask 7168
      %66 = vst.msk [vmem:[#allocation2] sm:$0xff] %vm65, %v64
    $region25: #{tpu_custom_call.1} parent=1 // pred_fallthru
      _
    // Predicated region
    $region26: #{tpu_custom_call.1} parent=1 // pred_check
      %p67 = pneg %p27
    $region27: #{tpu_custom_call.1} parent=1 // pred_check_branch
      %69 = sbr.rel (%p67) target = $region29
    $region28: #{tpu_custom_call.1} parent=1 // pred_region
      %v70 = vlaneseq
      %v71 = vshrl.u32 %v70, 7
      %s72 = smul.u32 0, 8
      %v73 = vstv %s72
      %v74 = vadd.s32 %v71, %v73
      %v75 = vld [vmem:[#allocation2] sm:$0xff]
      %vm76 = vcmp.lt.s32.totalorder %v74, 8
      %v77 = vsel %vm76, %v58, 0.0
      %v78 = vadd.f32 %v75, %v77
      %vm79 = vcmask 7168
      %80 = vst.msk [vmem:[#allocation2] sm:$0xff] %vm79, %v78
      %v81 = vld [vmem:[#allocation2] sm:$0xff]
      %v82 = vsel %vm79, %v81, 0.0
      %v83 = vrot.slane %v82, 4
      %v84 = vadd.f32 %v82, %v83
      %v85 = vrot.slane %v84, 2
      %v86 = vadd.f32 %v84, %v85
      %v87 = vrot.slane %v86, 1
      %v88 = vadd.f32 %v86, %v87
      %v89 = vmul.f32 %v88, 0.125
      %vm90 = vcmask 0
      %91 = vst.msk [vmem:[#allocation6] sm:$0x1] %vm90, %v89
    $region29: #{tpu_custom_call.1} parent=1 // pred_fallthru
      _
    // Predicated region
    $region30: #{tpu_custom_call.1} parent=1 // pred_check
      _
    $region31: #{tpu_custom_call.1} parent=1 // pred_check_branch
      %93 = sbr.rel (0) target = $region33
    $region32: #{tpu_custom_call.1} parent=1 // pred_region
      %s95 = ssub.s32 16, 16
      %96 = vsyncadd [#allocation5], %s95
      %s98 = sshll.u32 [#allocation6], 4
      %s99 = int_to_ptr.vmem [resolvable:$true] %s98
      %101 = dma.vmem_to_hbm [thread:$0]  %s99, 16, %s3, [#allocation5]
    $region33: #{tpu_custom_call.1} parent=1 // pred_fallthru
      _
    // Predicated region
    $region34: #{tpu_custom_call.1} parent=1 // pred_check
      _
    $region35: #{tpu_custom_call.1} parent=1 // pred_check_branch
      %103 = sbr.rel (0) target = $region37
    $region36: #{tpu_custom_call.1} parent=1 // pred_region
      %104 = dma.done [#allocation5], 16
    $region37: #{tpu_custom_call.1} parent=1 // pred_fallthru
      _
    %105 = vsyncpa [#allocation4], 1
    %106 = vsyncpa [#allocation5], 1

</llo_original>
